<compile_context>
chip_gen: v5e
topology: v5e:2x2
jax: 0.10.0
libtpu: 0.0.40
codegen_flags: <defaults>
</compile_context>

<pallas_src>
import functools

import jax
import jax.numpy as jnp
from jax.experimental import pallas as pl
from jax.experimental.pallas import tpu as pltpu


def _depth2space_kernel(x_ref, o_ref, *, r):
    # x_ref block: (1, Kc, r*r, H, W)   -- input planes for Kc output channels
    # o_ref block: (1, Kc, H, r, W*r)   -- 5-D output view; dim 3 is row offset i
    kc_block = x_ref.shape[1]
    H = x_ref.shape[3]
    W = x_ref.shape[4]

    # Hoisted: build the r one-hot column-interleave matrices once per kernel
    # invocation.  P_j[w, q] = 1  iff  q == w*r + j   (shape (W, W*r)).
    w_idx = jax.lax.broadcasted_iota(jnp.int32, (W, W * r), 0)
    q_idx = jax.lax.broadcasted_iota(jnp.int32, (W, W * r), 1)
    p_mats = [(q_idx == w_idx * r + j).astype(jnp.float32) for j in range(r)]

    for kc in range(kc_block):
        for i in range(r):
            # Interleave the r planes (i, j=0..r-1) along lanes:
            #   row[h, w*r + j] = x[..., i*r + j, h, w]
            acc = None
            for j in range(r):
                plane = x_ref[0, kc, i * r + j, :, :].astype(jnp.float32)
                part = jnp.dot(plane, p_mats[j],
                               preferred_element_type=jnp.float32)
                acc = part if acc is None else acc + part
            # Row interleave is free: store at row-offset i of the 5-D view;
            # the wrapper's final reshape merges (H, r) into H*r.
            o_ref[0, kc, :, i, :] = acc.astype(o_ref.dtype)


def _pick_channels_per_block(N, C_out, r, H, W, itemsize,
                             vmem_budget_bytes=16 * 1024 * 1024):
    """Choose how many output channels each grid step processes."""
    in_bytes = r * r * H * W * itemsize
    # Output block minor dims are (r, W*r); sublanes pad r up to 8 in VMEM.
    out_bytes = H * max(8, r) * W * r * itemsize
    per_channel = in_bytes + out_bytes
    # x2: BlockSpec double-buffers both input and output blocks.
    kc = max(1, min(C_out, int(vmem_budget_bytes // (2 * per_channel))))
    while C_out % kc != 0:
        kc -= 1
    # Keep at least 2 grid programs when possible (v7x has 2 TensorCores).
    while kc > 1 and N * (C_out // kc) < 2:
        kc -= 1
        while C_out % kc != 0:
            kc -= 1
    return kc


def depth2space(x, block_size, channels_per_block=None):
    """Pallas TPU implementation of torch.nn.PixelShuffle(block_size), NCHW."""
    N, C_in, H, W = x.shape
    r = block_size
    assert C_in % (r * r) == 0, "channels must be divisible by block_size**2"
    C_out = C_in // (r * r)

    if channels_per_block is None:
        channels_per_block = _pick_channels_per_block(
            N, C_out, r, H, W, x.dtype.itemsize)
    kc = channels_per_block
    assert C_out % kc == 0, "channels_per_block must divide C_out"

    # Free (contiguous) reshape: split the channel axis into (C_out, r*r).
    x5 = x.reshape(N, C_out, r * r, H, W)

    kernel = functools.partial(_depth2space_kernel, r=r)

    out5 = pl.pallas_call(
        kernel,
        # 5-D output view (N, C_out, H, r, W*r); merging (H, r) afterwards is a
        # free contiguous reshape to the NCHW result (N, C_out, H*r, W*r).
        out_shape=jax.ShapeDtypeStruct((N, C_out, H, r, W * r), x.dtype),
        grid=(N, C_out // kc),
        in_specs=[
            pl.BlockSpec((1, kc, r * r, H, W), lambda n, cb: (n, cb, 0, 0, 0)),
        ],
        out_specs=pl.BlockSpec((1, kc, H, r, W * r),
                               lambda n, cb: (n, cb, 0, 0, 0)),
        compiler_params=pltpu.CompilerParams(
            dimension_semantics=("parallel", "parallel"),
            vmem_limit_bytes=48 * 1024 * 1024,
        ),
    )(x5)

    return out5.reshape(N, C_out, H * r, W * r)


def _reference_depth2space(x, r):
    # Pure-JAX reference of PyTorch PixelShuffle (CRD) semantics.
    N, C_in, H, W = x.shape
    C = C_in // (r * r)
    y = x.reshape(N, C, r, r, H, W)
    y = jnp.transpose(y, (0, 1, 4, 2, 5, 3))  # (N, C, H, r, W, r)
    return y.reshape(N, C, H * r, W * r)


if __name__ == "__main__":
    block_size = 2
    N, C_out, H, W = 2, 2, 16, 16
    C_in = C_out * block_size * block_size  # 8

    key = jax.random.PRNGKey(0)
    x = jax.random.normal(key, (N, C_in, H, W), dtype=jnp.float32)

    out = depth2space(x, block_size)
    out = jax.block_until_ready(out)

    ref = _reference_depth2space(x, block_size)
    assert out.shape == (N, C_out, H * block_size, W * block_size)
    assert jnp.allclose(out, ref, atol=1e-6, rtol=1e-6), "mismatch vs reference"

    print("KERNEL_OK")
</pallas_src>

<mosaic_0001>
module attributes {stable_mosaic.version = 11 : i64} {
  func.func @_depth2space_kernel(%arg0: i32, %arg1: i32, %arg2: memref<1x2x4x16x16xf32, #tpu.memory_space<vmem>>, %arg3: memref<1x2x16x2x32xf32, #tpu.memory_space<vmem>>) attributes {dimension_semantics = [#tpu.dimension_semantics<parallel>, #tpu.dimension_semantics<parallel>], iteration_bounds = array<i64: 2, 1>, scalar_prefetch = 0 : i64, scratch_operands = 0 : i64, tpu.core_type = #tpu.core_type<tc>, window_params = [{transform_indices = @transform_0, window_bounds = array<i64: 1, 2, 4, 16, 16>}, {transform_indices = @transform_1, window_bounds = array<i64: 1, 2, 16, 2, 32>}]} {
    %0 = tpu.iota {dimensions = array<i32: 0>} : vector<16x32xi32>
    %1 = tpu.iota {dimensions = array<i32: 1>} : vector<16x32xi32>
    %c2_i32 = arith.constant 2 : i32
    %2 = vector.broadcast %c2_i32 : i32 to vector<16x32xi32>
    %3 = arith.muli %0, %2 : vector<16x32xi32>
    %c0_i32 = arith.constant 0 : i32
    %4 = vector.broadcast %c0_i32 : i32 to vector<16x32xi32>
    %5 = arith.addi %3, %4 : vector<16x32xi32>
    %6 = arith.cmpi eq, %1, %5 : vector<16x32xi32>
    %7 = arith.extui %6 : vector<16x32xi1> to vector<16x32xi32>
    %8 = arith.sitofp %7 : vector<16x32xi32> to vector<16x32xf32>
    %c2_i32_0 = arith.constant 2 : i32
    %9 = vector.broadcast %c2_i32_0 : i32 to vector<16x32xi32>
    %10 = arith.muli %0, %9 : vector<16x32xi32>
    %c1_i32 = arith.constant 1 : i32
    %11 = vector.broadcast %c1_i32 : i32 to vector<16x32xi32>
    %12 = arith.addi %10, %11 : vector<16x32xi32>
    %13 = arith.cmpi eq, %1, %12 : vector<16x32xi32>
    %14 = arith.extui %13 : vector<16x32xi1> to vector<16x32xi32>
    %15 = arith.sitofp %14 : vector<16x32xi32> to vector<16x32xf32>
    %c0 = arith.constant 0 : index
    %c0_1 = arith.constant 0 : index
    %c0_2 = arith.constant 0 : index
    %c0_3 = arith.constant 0 : index
    %c0_4 = arith.constant 0 : index
    %16 = vector.load %arg2[%c0, %c0_1, %c0_2, %c0_3, %c0_4] : memref<1x2x4x16x16xf32, #tpu.memory_space<vmem>>, vector<1x1x1x16x16xf32>
    %17 = vector.shape_cast %16 : vector<1x1x1x16x16xf32> to vector<16x16xf32>
    %cst = arith.constant dense<0.000000e+00> : vector<16x32xf32>
    %18 = tpu.matmul %17, %8, %cst {dimension_numbers = #tpu.dot_dimension_numbers<[1], [0], [0], [1], [0, 0, 1, 1], [], []>} : vector<16x16xf32>, vector<16x32xf32>, vector<16x32xf32> -> vector<16x32xf32>
    %c0_5 = arith.constant 0 : index
    %c0_6 = arith.constant 0 : index
    %c1 = arith.constant 1 : index
    %c0_7 = arith.constant 0 : index
    %c0_8 = arith.constant 0 : index
    %19 = vector.load %arg2[%c0_5, %c0_6, %c1, %c0_7, %c0_8] : memref<1x2x4x16x16xf32, #tpu.memory_space<vmem>>, vector<1x1x1x16x16xf32>
    %20 = vector.shape_cast %19 : vector<1x1x1x16x16xf32> to vector<16x16xf32>
    %cst_9 = arith.constant dense<0.000000e+00> : vector<16x32xf32>
    %21 = tpu.matmul %20, %15, %cst_9 {dimension_numbers = #tpu.dot_dimension_numbers<[1], [0], [0], [1], [0, 0, 1, 1], [], []>} : vector<16x16xf32>, vector<16x32xf32>, vector<16x32xf32> -> vector<16x32xf32>
    %22 = arith.addf %18, %21 : vector<16x32xf32>
    %c0_10 = arith.constant 0 : index
    %c0_11 = arith.constant 0 : index
    %c0_12 = arith.constant 0 : index
    %c0_13 = arith.constant 0 : index
    %c0_14 = arith.constant 0 : index
    %23 = vector.load %arg3[%c0_10, %c0_11, %c0_12, %c0_13, %c0_14] : memref<1x2x16x2x32xf32, #tpu.memory_space<vmem>>, vector<1x1x16x1x32xf32>
    %24 = vector.shape_cast %23 : vector<1x1x16x1x32xf32> to vector<16x32xf32>
    %25 = vector.shape_cast %22 : vector<16x32xf32> to vector<1x1x16x1x32xf32>
    tpu.vector_store %arg3[%c0_10, %c0_11, %c0_12, %c0_13, %c0_14], %25 {strides = array<i32>} : memref<1x2x16x2x32xf32, #tpu.memory_space<vmem>>, vector<1x1x16x1x32xf32>,
    %c0_15 = arith.constant 0 : index
    %c0_16 = arith.constant 0 : index
    %c2 = arith.constant 2 : index
    %c0_17 = arith.constant 0 : index
    %c0_18 = arith.constant 0 : index
    %26 = vector.load %arg2[%c0_15, %c0_16, %c2, %c0_17, %c0_18] : memref<1x2x4x16x16xf32, #tpu.memory_space<vmem>>, vector<1x1x1x16x16xf32>
    %27 = vector.shape_cast %26 : vector<1x1x1x16x16xf32> to vector<16x16xf32>
    %cst_19 = arith.constant dense<0.000000e+00> : vector<16x32xf32>
    %28 = tpu.matmul %27, %8, %cst_19 {dimension_numbers = #tpu.dot_dimension_numbers<[1], [0], [0], [1], [0, 0, 1, 1], [], []>} : vector<16x16xf32>, vector<16x32xf32>, vector<16x32xf32> -> vector<16x32xf32>
    %c0_20 = arith.constant 0 : index
    %c0_21 = arith.constant 0 : index
    %c3 = arith.constant 3 : index
    %c0_22 = arith.constant 0 : index
    %c0_23 = arith.constant 0 : index
    %29 = vector.load %arg2[%c0_20, %c0_21, %c3, %c0_22, %c0_23] : memref<1x2x4x16x16xf32, #tpu.memory_space<vmem>>, vector<1x1x1x16x16xf32>
    %30 = vector.shape_cast %29 : vector<1x1x1x16x16xf32> to vector<16x16xf32>
    %cst_24 = arith.constant dense<0.000000e+00> : vector<16x32xf32>
    %31 = tpu.matmul %30, %15, %cst_24 {dimension_numbers = #tpu.dot_dimension_numbers<[1], [0], [0], [1], [0, 0, 1, 1], [], []>} : vector<16x16xf32>, vector<16x32xf32>, vector<16x32xf32> -> vector<16x32xf32>
    %32 = arith.addf %28, %31 : vector<16x32xf32>
    %c0_25 = arith.constant 0 : index
    %c0_26 = arith.constant 0 : index
    %c0_27 = arith.constant 0 : index
    %c1_28 = arith.constant 1 : index
    %c0_29 = arith.constant 0 : index
    %33 = vector.load %arg3[%c0_25, %c0_26, %c0_27, %c1_28, %c0_29] : memref<1x2x16x2x32xf32, #tpu.memory_space<vmem>>, vector<1x1x16x1x32xf32>
    %34 = vector.shape_cast %33 : vector<1x1x16x1x32xf32> to vector<16x32xf32>
    %35 = vector.shape_cast %32 : vector<16x32xf32> to vector<1x1x16x1x32xf32>
    tpu.vector_store %arg3[%c0_25, %c0_26, %c0_27, %c1_28, %c0_29], %35 {strides = array<i32>} : memref<1x2x16x2x32xf32, #tpu.memory_space<vmem>>, vector<1x1x16x1x32xf32>,
    %c0_30 = arith.constant 0 : index
    %c1_31 = arith.constant 1 : index
    %c0_32 = arith.constant 0 : index
    %c0_33 = arith.constant 0 : index
    %c0_34 = arith.constant 0 : index
    %36 = vector.load %arg2[%c0_30, %c1_31, %c0_32, %c0_33, %c0_34] : memref<1x2x4x16x16xf32, #tpu.memory_space<vmem>>, vector<1x1x1x16x16xf32>
    %37 = vector.shape_cast %36 : vector<1x1x1x16x16xf32> to vector<16x16xf32>
    %cst_35 = arith.constant dense<0.000000e+00> : vector<16x32xf32>
    %38 = tpu.matmul %37, %8, %cst_35 {dimension_numbers = #tpu.dot_dimension_numbers<[1], [0], [0], [1], [0, 0, 1, 1], [], []>} : vector<16x16xf32>, vector<16x32xf32>, vector<16x32xf32> -> vector<16x32xf32>
    %c0_36 = arith.constant 0 : index
    %c1_37 = arith.constant 1 : index
    %c1_38 = arith.constant 1 : index
    %c0_39 = arith.constant 0 : index
    %c0_40 = arith.constant 0 : index
    %39 = vector.load %arg2[%c0_36, %c1_37, %c1_38, %c0_39, %c0_40] : memref<1x2x4x16x16xf32, #tpu.memory_space<vmem>>, vector<1x1x1x16x16xf32>
    %40 = vector.shape_cast %39 : vector<1x1x1x16x16xf32> to vector<16x16xf32>
    %cst_41 = arith.constant dense<0.000000e+00> : vector<16x32xf32>
    %41 = tpu.matmul %40, %15, %cst_41 {dimension_numbers = #tpu.dot_dimension_numbers<[1], [0], [0], [1], [0, 0, 1, 1], [], []>} : vector<16x16xf32>, vector<16x32xf32>, vector<16x32xf32> -> vector<16x32xf32>
    %42 = arith.addf %38, %41 : vector<16x32xf32>
    %c0_42 = arith.constant 0 : index
    %c1_43 = arith.constant 1 : index
    %c0_44 = arith.constant 0 : index
    %c0_45 = arith.constant 0 : index
    %c0_46 = arith.constant 0 : index
    %43 = vector.load %arg3[%c0_42, %c1_43, %c0_44, %c0_45, %c0_46] : memref<1x2x16x2x32xf32, #tpu.memory_space<vmem>>, vector<1x1x16x1x32xf32>
    %44 = vector.shape_cast %43 : vector<1x1x16x1x32xf32> to vector<16x32xf32>
    %45 = vector.shape_cast %42 : vector<16x32xf32> to vector<1x1x16x1x32xf32>
    tpu.vector_store %arg3[%c0_42, %c1_43, %c0_44, %c0_45, %c0_46], %45 {strides = array<i32>} : memref<1x2x16x2x32xf32, #tpu.memory_space<vmem>>, vector<1x1x16x1x32xf32>,
    %c0_47 = arith.constant 0 : index
    %c1_48 = arith.constant 1 : index
    %c2_49 = arith.constant 2 : index
    %c0_50 = arith.constant 0 : index
    %c0_51 = arith.constant 0 : index
    %46 = vector.load %arg2[%c0_47, %c1_48, %c2_49, %c0_50, %c0_51] : memref<1x2x4x16x16xf32, #tpu.memory_space<vmem>>, vector<1x1x1x16x16xf32>
    %47 = vector.shape_cast %46 : vector<1x1x1x16x16xf32> to vector<16x16xf32>
    %cst_52 = arith.constant dense<0.000000e+00> : vector<16x32xf32>
    %48 = tpu.matmul %47, %8, %cst_52 {dimension_numbers = #tpu.dot_dimension_numbers<[1], [0], [0], [1], [0, 0, 1, 1], [], []>} : vector<16x16xf32>, vector<16x32xf32>, vector<16x32xf32> -> vector<16x32xf32>
    %c0_53 = arith.constant 0 : index
    %c1_54 = arith.constant 1 : index
    %c3_55 = arith.constant 3 : index
    %c0_56 = arith.constant 0 : index
    %c0_57 = arith.constant 0 : index
    %49 = vector.load %arg2[%c0_53, %c1_54, %c3_55, %c0_56, %c0_57] : memref<1x2x4x16x16xf32, #tpu.memory_space<vmem>>, vector<1x1x1x16x16xf32>
    %50 = vector.shape_cast %49 : vector<1x1x1x16x16xf32> to vector<16x16xf32>
    %cst_58 = arith.constant dense<0.000000e+00> : vector<16x32xf32>
    %51 = tpu.matmul %50, %15, %cst_58 {dimension_numbers = #tpu.dot_dimension_numbers<[1], [0], [0], [1], [0, 0, 1, 1], [], []>} : vector<16x16xf32>, vector<16x32xf32>, vector<16x32xf32> -> vector<16x32xf32>
    %52 = arith.addf %48, %51 : vector<16x32xf32>
    %c0_59 = arith.constant 0 : index
    %c1_60 = arith.constant 1 : index
    %c0_61 = arith.constant 0 : index
    %c1_62 = arith.constant 1 : index
    %c0_63 = arith.constant 0 : index
    %53 = vector.load %arg3[%c0_59, %c1_60, %c0_61, %c1_62, %c0_63] : memref<1x2x16x2x32xf32, #tpu.memory_space<vmem>>, vector<1x1x16x1x32xf32>
    %54 = vector.shape_cast %53 : vector<1x1x16x1x32xf32> to vector<16x32xf32>
    %55 = vector.shape_cast %52 : vector<16x32xf32> to vector<1x1x16x1x32xf32>
    tpu.vector_store %arg3[%c0_59, %c1_60, %c0_61, %c1_62, %c0_63], %55 {strides = array<i32>} : memref<1x2x16x2x32xf32, #tpu.memory_space<vmem>>, vector<1x1x16x1x32xf32>,
    return
  }
  func.func @transform_0(%arg0: i32, %arg1: i32) -> (i32, i32, i32, i32, i32) {
    %c0_i32 = arith.constant 0 : i32
    %c0_i32_0 = arith.constant 0 : i32
    %c0_i32_1 = arith.constant 0 : i32
    %c0_i32_2 = arith.constant 0 : i32
    return %arg0, %arg1, %c0_i32, %c0_i32_0, %c0_i32_1 : i32, i32, i32, i32, i32
  }
  func.func @transform_1(%arg0: i32, %arg1: i32) -> (i32, i32, i32, i32, i32) {
    %c0_i32 = arith.constant 0 : i32
    %c0_i32_0 = arith.constant 0 : i32
    %c0_i32_1 = arith.constant 0 : i32
    %c0_i32_2 = arith.constant 0 : i32
    return %arg0, %arg1, %c0_i32, %c0_i32_0, %c0_i32_1 : i32, i32, i32, i32, i32
  }
}

</mosaic_0001>

<llo_original>
// kernel: tpu_custom_call.1
$region0: #{tpu_custom_call.1}
  #allocation0 [shape = 'u32[]', space=smem, size = 0x4, offset = 0x4, fixed_abs, tag = 'smem constant byte address 0x4 - core index']
  #allocation1 [shape = 'u32[72,128]{1,0:T(1,128)}', space=vmem, size = 0x9000, scoped, tag = 'internal scratch']
  %s0 = inlined_call_operand.hbm [shape: f32[2,2,4,16,16], index: 0, kind: input, shape index: {}]
  %s1 = inlined_call_operand.hbm [shape: f32[2,2,16,2,32], index: 1, kind: output, shape index: {}]
  %s2 = sld [smem:[#allocation0]]
  $region41: #{tpu_custom_call.1} parent=0
    _
  %s4 = ssub.s32 1, %s2
  %s5 = scalar_select 0, %s4, %s2
  $region1: #{tpu_custom_call.1} parent=0
    #allocation2 [shape = 'u8[131072]{0}', space=vmem, size = 0x20000, scoped, tag = 'input window, operand 0']
    #allocation3 [shape = 's32[2]{0}', space=sflag, size = 0x8, scoped, tag = 'scoped memory for tpu_custom_call.1']
    #allocation4 [shape = 's32[2]{0}', space=sflag, size = 0x8, scoped, tag = 'scoped memory for tpu_custom_call.1']
    #allocation5 [shape = 'u8[65536]{0}', space=vmem, size = 0x10000, scoped, tag = 'output window, operand 0']
    %6 = vsyncpa [#allocation3], 0
    %s7 = scalar_lea.sflag [#allocation3], 1
    %8 = vsyncpa %s7, 0
    %9 = vsyncpa [#allocation4], 0
    %s10 = scalar_lea.sflag [#allocation4], 1
    %11 = vsyncpa %s10, 0
    loop: start=0, step=1, limit=4
    $region2: #{tpu_custom_call.1} parent=1 // loop_pre_header
      _
    $region3: #{tpu_custom_call.1} parent=1 // loop_header
      %s13 = sphi 0, %s17
      %p14 = scmp.ge.s32.totalorder %s13, 4
      %s20 = sphi 0, %s32
      %s21 = sphi 0, %s28
      %s22 = sphi 0, %s20
      %s23 = sphi 0, %s21
      %s24 = sphi 0, %s22
      %s25 = sphi 0, %s23
      %s37 = sphi 0, %s39
      %s40 = sphi 0, %s37
      %s41 = sphi 0, %s40
      %s57 = sphi 0, %s41
      %s65 = sphi 0, %s67
      %s68 = sphi 0, %s65
      %s69 = sphi 0, %s68
      %s85 = sphi 0, %s69
    $region4: #{tpu_custom_call.1} parent=1 // loop_header_branch
      %16 = sbr.rel (%p14) target = $region8
    $region5: #{tpu_custom_call.1} parent=1 // loop_body
      %s18 = ssub.s32 %s13, 1
      %s19 = ssub.s32 %s13, 2
      %s26 = sadd.s32 1, %s21
      %p27 = scmp.ge.s32.totalorder %s26, 1
      %s28 = scalar_select %p27, 0, %s26
      %s29 = sadd.s32 1, %s20
      %s30 = scalar_select %p27, %s29, %s20
      %p31 = scmp.ge.s32.totalorder %s30, 2
      %s32 = scalar_select %p31, 0, %s30
      %s33 = ssub.s32 %s20, %s32
      %s34 = ssub.s32 %s21, %s28
      %s35 = sor.u32 %s33, %s34
      %p36 = scmp.eq.s32.totalorder %s35, 0
      %s38 = sadd.s32 %s37, 1
      %s39 = scalar_select %p36, %s37, %s38
      %p42 = pneg %p36
      %p43 = scmp.eq.s32.totalorder %s13, 1
      %p44 = por %p42, %p43
      %p45 = scmp.ne.s32.totalorder %s37, %s40
      %p46 = scmp.eq.s32.totalorder %s13, 0
      %p47 = por %p45, %p46
      %p48 = scmp.ne.s32.totalorder %s37, %s40
      %p49 = scmp.eq.s32.totalorder %s18, 1
      %p50 = por %p48, %p49
      %p51 = scmp.ne.s32.totalorder %s40, %s41
      %p52 = scmp.eq.s32.totalorder %s18, 0
      %p53 = por %p51, %p52
      %p54 = scmp.ne.s32.totalorder %s40, %s41
      %p55 = scmp.eq.s32.totalorder %s19, 1
      %p56 = por %p54, %p55
      %p58 = scmp.ne.s32.totalorder %s41, %s57
      %p59 = scmp.eq.s32.totalorder %s19, 0
      %p60 = por %p58, %p59
      %s61 = ssub.s32 %s20, %s32
      %s62 = ssub.s32 %s21, %s28
      %s63 = sor.u32 %s61, %s62
      %p64 = scmp.eq.s32.totalorder %s63, 0
      %s66 = sadd.s32 %s65, 1
      %s67 = scalar_select %p64, %s65, %s66
      %p70 = pneg %p64
      %p71 = scmp.eq.s32.totalorder %s13, 1
      %p72 = por %p70, %p71
      %p73 = scmp.ne.s32.totalorder %s65, %s68
      %p74 = scmp.eq.s32.totalorder %s13, 0
      %p75 = por %p73, %p74
      %p76 = scmp.ne.s32.totalorder %s65, %s68
      %p77 = scmp.eq.s32.totalorder %s18, 1
      %p78 = por %p76, %p77
      %p79 = scmp.ne.s32.totalorder %s68, %s69
      %p80 = scmp.eq.s32.totalorder %s18, 0
      %p81 = por %p79, %p80
      %p82 = scmp.ne.s32.totalorder %s68, %s69
      %p83 = scmp.eq.s32.totalorder %s19, 1
      %p84 = por %p82, %p83
      %p86 = scmp.ne.s32.totalorder %s69, %s85
      %p87 = scmp.eq.s32.totalorder %s19, 0
      %p88 = por %p86, %p87
      %p89 = scmp.le.s32.totalorder 1, %s13
      %p90 = scmp.lt.s32.totalorder %s13, 3
      %p91 = pnand %p89, %p90
      %p92 = pneg %p91
      // Predicated region
      $region9: #{tpu_custom_call.1} parent=5 // pred_check
        _
      $region10: #{tpu_custom_call.1} parent=5 // pred_check_branch
        %94 = sbr.rel (%p91) target = $region12
      $region11: #{tpu_custom_call.1} parent=5 // pred_region
        %s95 = ssub.s32 %s13, 1
      $region12: #{tpu_custom_call.1} parent=5 // pred_fallthru
        _
      %p96 = scmp.lt.s32.totalorder %s13, 2
      // Predicated region
      $region13: #{tpu_custom_call.1} parent=5 // pred_check
        %p97 = pneg %p96
      $region14: #{tpu_custom_call.1} parent=5 // pred_check_branch
        %99 = sbr.rel (%p97) target = $region16
      $region15: #{tpu_custom_call.1} parent=5 // pred_region
        // Predicated region
        $region17: #{tpu_custom_call.1} parent=15 // pred_check
          %p100 = pneg %p47
        $region18: #{tpu_custom_call.1} parent=15 // pred_check_branch
          %102 = sbr.rel (%p100) target = $region20
        $region19: #{tpu_custom_call.1} parent=15 // pred_region
          %s103 = sand.u32 %s37, 1
          %s104 = scalar_lea.sflag [#allocation3], %s103
          %s105 = sand.u32 %s37, 1
          %s106 = smul.addr %s105, 128
          %s107 = scalar_lea.vmem [#allocation2], %s106
          %s108 = smul.u32 2, %s21
          %110 = vsyncadd %s104, 0
          %s111 = smul.addr %s108, 8
          %s112 = smul.addr %s20, 16
          %s113 = sadd.s32 %s111, %s112
          %s114 = smul.addr %s113, 8
          %s115 = scalar_lea.hbm %s0, %s114
          %s116 = sshll.u32 %s115, 4
          %s117 = int_to_ptr.hbm [resolvable:$true] %s116
          %s118 = sshll.u32 %s107, 4
          %s119 = int_to_ptr.vmem [resolvable:$true] %s118
          %124 = dma.hbm_to_vmem [thread:$0]  %s117, 2048, %s119, %s104, 128, 128, 8
        $region20: #{tpu_custom_call.1} parent=15 // pred_fallthru
          _
      $region16: #{tpu_custom_call.1} parent=5 // pred_fallthru
        _
      %p125 = scmp.le.s32.totalorder 1, %s13
      %p126 = scmp.lt.s32.totalorder %s13, 3
      %p127 = pnand %p125, %p126
      %p128 = pneg %p127
      // Predicated region
      $region21: #{tpu_custom_call.1} parent=5 // pred_check
        _
      $region22: #{tpu_custom_call.1} parent=5 // pred_check_branch
        %130 = sbr.rel (%p127) target = $region24
      $region23: #{tpu_custom_call.1} parent=5 // pred_region
        %s131 = ssub.s32 %s13, 1
        %s132 = sand.u32 %s40, 1
        %s133 = scalar_lea.sflag [#allocation3], %s132
        %s134 = sand.u32 %s40, 1
        %s135 = smul.addr %s134, 128
        %s136 = scalar_lea.vmem [#allocation2], %s135
        // Predicated region
        $region25: #{tpu_custom_call.1} parent=23 // pred_check
          %p137 = pneg %p53
        $region26: #{tpu_custom_call.1} parent=23 // pred_check_branch
          %139 = sbr.rel (%p137) target = $region28
        $region27: #{tpu_custom_call.1} parent=23 // pred_region
          %141 = dma.done %s133, 2048
        $region28: #{tpu_custom_call.1} parent=23 // pred_fallthru
          _
        %s142 = sand.u32 %s40, 1
        %s143 = scalar_lea.sflag [#allocation3], %s142
        %s144 = sand.u32 %s40, 1
        %s145 = smul.addr %s144, 128
        %s146 = scalar_lea.vmem [#allocation2], %s145
        %p147 = pneg %p53
        %p148 = pneg %p50
        %p149 = pneg %p81
        %p150 = pneg %p78
        %s151 = sand.u32 %s68, 1
        %s152 = scalar_lea.sflag [#allocation4], %s151
        %s153 = sand.u32 %s68, 1
        %s154 = smul.addr %s153, 64
        %s155 = scalar_lea.vmem [#allocation5], %s154
        %s156 = smul.u32 2, %s23
        %s157 = smul.u32 2, %s23
        %v158 = vlaneseq
        %v159 = vshrl.u32 %v158, 7
        %v160 = vadd.s32 %v159, 8
        %v161 = vlaneseq
        %v162 = vand.u32 %v161, 127
        %v163 = vmul.u32 %v159, 2
        %v164 = vmul.u32 %v160, 2
        %vm165 = vcmp.eq.s32.totalorder %v162, %v163
        %vm166 = vcmp.eq.s32.totalorder %v162, %v164
        %v167 = vsel %vm165, 1, 0
        %v168 = vsel %vm166, 1, 0
        %v169 = vcvt.s32.f32 %v167
        %v170 = vcvt.s32.f32 %v168
        %v171 = vadd.s32 %v163, 1
        %v172 = vadd.s32 %v164, 1
        %vm173 = vcmp.eq.s32.totalorder %v162, %v171
        %vm174 = vcmp.eq.s32.totalorder %v162, %v172
        %v175 = vsel %vm173, 1, 0
        %v176 = vsel %vm174, 1, 0
        %v177 = vcvt.s32.f32 %v175
        %v178 = vcvt.s32.f32 %v176
        %v179 = vld [vmem:[%s136] sm:$0xff]
        %v180 = vld [vmem:[%s136 + $0x8] sm:$0xff]
        %s181 = scalar_lea.vmem %s136, 16 [#allocation2]
        %v182 = vld [vmem:[%s181] sm:$0xff]
        %v183 = vld [vmem:[%s181 + $0x8] sm:$0xff]
        %vm184 = vcmask 130048
        %v186 = vsel %vm184, %v182, 0
        %v189 = vsel %vm184, %v183, 0
        %191 = vmatpush.msra.mxu0 0.0
        %192 = vmatpush.msra.mxu0 0.0
        %193 = vmatpush.msra.mxu0 0.0
        %194 = vmatpush.msra.mxu0 0.0
        %195 = vmatpush.msra.mxu0 0.0
        %196 = vmatpush.msra.mxu0 0.0
        %197 = vmatpush.msra.mxu0 0.0
        %198 = vmatpush.msra.mxu0 0.0
        %199 = vmatpush.msra.mxu0 0.0
        %200 = vmatpush.msra.mxu0 0.0
        %201 = vmatpush.msra.mxu0 0.0
        %202 = vmatpush.msra.mxu0 0.0
        %203 = vmatpush.msra.mxu0 0.0
        %204 = vmatpush.msra.mxu0 0.0
        %205 = vmatpush.msra.mxu0 %v178
        %206 = vmatpush.msra.mxu0 %v177
        %207 = vmatmul.f32.gmra.mxu0 %v186
        %v208 = vpop.f32.mrf.mxu0
        %v209 = vadd.f32 0.0, %v208
        %210 = vmatmul.f32.gmra.mxu0 %v189
        %v211 = vpop.f32.mrf.mxu0
        %v212 = vadd.f32 0.0, %v211
        %213 = vdwg.mxu0
        %v215 = vsel %vm184, %v179, 0
        %v218 = vsel %vm184, %v180, 0
        %220 = vmatpush.msra.mxu0 0.0
        %221 = vmatpush.msra.mxu0 0.0
        %222 = vmatpush.msra.mxu0 0.0
        %223 = vmatpush.msra.mxu0 0.0
        %224 = vmatpush.msra.mxu0 0.0
        %225 = vmatpush.msra.mxu0 0.0
        %226 = vmatpush.msra.mxu0 0.0
        %227 = vmatpush.msra.mxu0 0.0
        %228 = vmatpush.msra.mxu0 0.0
        %229 = vmatpush.msra.mxu0 0.0
        %230 = vmatpush.msra.mxu0 0.0
        %231 = vmatpush.msra.mxu0 0.0
        %232 = vmatpush.msra.mxu0 0.0
        %233 = vmatpush.msra.mxu0 0.0
        %234 = vmatpush.msra.mxu0 %v170
        %235 = vmatpush.msra.mxu0 %v169
        %236 = vmatmul.f32.gmra.mxu0 %v215
        %v237 = vpop.f32.mrf.mxu0
        %v238 = vadd.f32 %v209, %v237
        %239 = vmatmul.f32.gmra.mxu0 %v218
        %v240 = vpop.f32.mrf.mxu0
        %v241 = vadd.f32 %v212, %v240
        %242 = vdwg.mxu0
        %v245 = vrot.slane %v238, 1
        %v246 = vrot.slane %v238, 2
        %v247 = vrot.slane %v238, 3
        %v248 = vrot.slane %v238, 4
        %v249 = vrot.slane %v238, 5
        %v250 = vrot.slane %v238, 6
        %v251 = vrot.slane %v238, 7
        %v252 = vrot.slane %v241, 1
        %v253 = vrot.slane %v241, 2
        %v254 = vrot.slane %v241, 3
        %v255 = vrot.slane %v241, 4
        %v256 = vrot.slane %v241, 5
        %v257 = vrot.slane %v241, 6
        %v258 = vrot.slane %v241, 7
        %vm273 = vcmask 253952
        %274 = vst.msk [vmem:[%s155] sm:$0x1] %vm273, %v238
        %275 = vst.msk [vmem:[%s155 + $0x2] sm:$0x1] %vm273, %v245
        %276 = vst.msk [vmem:[%s155 + $0x4] sm:$0x1] %vm273, %v246
        %277 = vst.msk [vmem:[%s155 + $0x6] sm:$0x1] %vm273, %v247
        %278 = vst.msk [vmem:[%s155 + $0x8] sm:$0x1] %vm273, %v248
        %279 = vst.msk [vmem:[%s155 + $0xa] sm:$0x1] %vm273, %v249
        %280 = vst.msk [vmem:[%s155 + $0xc] sm:$0x1] %vm273, %v250
        %281 = vst.msk [vmem:[%s155 + $0xe] sm:$0x1] %vm273, %v251
        %282 = vst.msk [vmem:[%s155 + $0x10] sm:$0x1] %vm273, %v241
        %283 = vst.msk [vmem:[%s155 + $0x12] sm:$0x1] %vm273, %v252
        %284 = vst.msk [vmem:[%s155 + $0x14] sm:$0x1] %vm273, %v253
        %285 = vst.msk [vmem:[%s155 + $0x16] sm:$0x1] %vm273, %v254
        %286 = vst.msk [vmem:[%s155 + $0x18] sm:$0x1] %vm273, %v255
        %287 = vst.msk [vmem:[%s155 + $0x1a] sm:$0x1] %vm273, %v256
        %288 = vst.msk [vmem:[%s155 + $0x1c] sm:$0x1] %vm273, %v257
        %289 = vst.msk [vmem:[%s155 + $0x1e] sm:$0x1] %vm273, %v258
        %s290 = scalar_lea.vmem %s136, 32 [#allocation2]
        %v291 = vld [vmem:[%s290] sm:$0xff]
        %v292 = vld [vmem:[%s290 + $0x8] sm:$0xff]
        %s293 = scalar_lea.vmem %s136, 48 [#allocation2]
        %v294 = vld [vmem:[%s293] sm:$0xff]
        %v295 = vld [vmem:[%s293 + $0x8] sm:$0xff]
        %v297 = vsel %vm184, %v294, 0
        %v300 = vsel %vm184, %v295, 0
        %302 = vmatpush.msra.mxu0 0.0
        %303 = vmatpush.msra.mxu0 0.0
        %304 = vmatpush.msra.mxu0 0.0
        %305 = vmatpush.msra.mxu0 0.0
        %306 = vmatpush.msra.mxu0 0.0
        %307 = vmatpush.msra.mxu0 0.0
        %308 = vmatpush.msra.mxu0 0.0
        %309 = vmatpush.msra.mxu0 0.0
        %310 = vmatpush.msra.mxu0 0.0
        %311 = vmatpush.msra.mxu0 0.0
        %312 = vmatpush.msra.mxu0 0.0
        %313 = vmatpush.msra.mxu0 0.0
        %314 = vmatpush.msra.mxu0 0.0
        %315 = vmatpush.msra.mxu0 0.0
        %316 = vmatpush.msra.mxu0 %v178
        %317 = vmatpush.msra.mxu0 %v177
        %318 = vmatmul.f32.gmra.mxu0 %v297
        %v319 = vpop.f32.mrf.mxu0
        %v320 = vadd.f32 0.0, %v319
        %321 = vmatmul.f32.gmra.mxu0 %v300
        %v322 = vpop.f32.mrf.mxu0
        %v323 = vadd.f32 0.0, %v322
        %324 = vdwg.mxu0
        %v326 = vsel %vm184, %v291, 0
        %v329 = vsel %vm184, %v292, 0
        %331 = vmatpush.msra.mxu0 0.0
        %332 = vmatpush.msra.mxu0 0.0
        %333 = vmatpush.msra.mxu0 0.0
        %334 = vmatpush.msra.mxu0 0.0
        %335 = vmatpush.msra.mxu0 0.0
        %336 = vmatpush.msra.mxu0 0.0
        %337 = vmatpush.msra.mxu0 0.0
        %338 = vmatpush.msra.mxu0 0.0
        %339 = vmatpush.msra.mxu0 0.0
        %340 = vmatpush.msra.mxu0 0.0
        %341 = vmatpush.msra.mxu0 0.0
        %342 = vmatpush.msra.mxu0 0.0
        %343 = vmatpush.msra.mxu0 0.0
        %344 = vmatpush.msra.mxu0 0.0
        %345 = vmatpush.msra.mxu0 %v170
        %346 = vmatpush.msra.mxu0 %v169
        %347 = vmatmul.f32.gmra.mxu0 %v326
        %v348 = vpop.f32.mrf.mxu0
        %v349 = vadd.f32 %v320, %v348
        %350 = vmatmul.f32.gmra.mxu0 %v329
        %v351 = vpop.f32.mrf.mxu0
        %v352 = vadd.f32 %v323, %v351
        %353 = vdwg.mxu0
        %v356 = vrot.slane %v349, 1
        %v357 = vrot.slane %v349, 2
        %v358 = vrot.slane %v349, 3
        %v359 = vrot.slane %v349, 4
        %v360 = vrot.slane %v349, 5
        %v361 = vrot.slane %v349, 6
        %v362 = vrot.slane %v349, 7
        %v363 = vrot.slane %v352, 1
        %v364 = vrot.slane %v352, 2
        %v365 = vrot.slane %v352, 3
        %v366 = vrot.slane %v352, 4
        %v367 = vrot.slane %v352, 5
        %v368 = vrot.slane %v352, 6
        %v369 = vrot.slane %v352, 7
        %384 = vst.msk [vmem:[%s155 + $0x1] sm:$0x1] %vm273, %v349
        %385 = vst.msk [vmem:[%s155 + $0x3] sm:$0x1] %vm273, %v356
        %386 = vst.msk [vmem:[%s155 + $0x5] sm:$0x1] %vm273, %v357
        %387 = vst.msk [vmem:[%s155 + $0x7] sm:$0x1] %vm273, %v358
        %388 = vst.msk [vmem:[%s155 + $0x9] sm:$0x1] %vm273, %v359
        %389 = vst.msk [vmem:[%s155 + $0xb] sm:$0x1] %vm273, %v360
        %390 = vst.msk [vmem:[%s155 + $0xd] sm:$0x1] %vm273, %v361
        %391 = vst.msk [vmem:[%s155 + $0xf] sm:$0x1] %vm273, %v362
        %392 = vst.msk [vmem:[%s155 + $0x11] sm:$0x1] %vm273, %v352
        %393 = vst.msk [vmem:[%s155 + $0x13] sm:$0x1] %vm273, %v363
        %394 = vst.msk [vmem:[%s155 + $0x15] sm:$0x1] %vm273, %v364
        %395 = vst.msk [vmem:[%s155 + $0x17] sm:$0x1] %vm273, %v365
        %396 = vst.msk [vmem:[%s155 + $0x19] sm:$0x1] %vm273, %v366
        %397 = vst.msk [vmem:[%s155 + $0x1b] sm:$0x1] %vm273, %v367
        %398 = vst.msk [vmem:[%s155 + $0x1d] sm:$0x1] %vm273, %v368
        %399 = vst.msk [vmem:[%s155 + $0x1f] sm:$0x1] %vm273, %v369
        %s400 = scalar_lea.vmem %s136, 64 [#allocation2]
        %v401 = vld [vmem:[%s400] sm:$0xff]
        %v402 = vld [vmem:[%s400 + $0x8] sm:$0xff]
        %s403 = scalar_lea.vmem %s136, 80 [#allocation2]
        %v404 = vld [vmem:[%s403] sm:$0xff]
        %v405 = vld [vmem:[%s403 + $0x8] sm:$0xff]
        %v407 = vsel %vm184, %v404, 0
        %v410 = vsel %vm184, %v405, 0
        %412 = vmatpush.msra.mxu0 0.0
        %413 = vmatpush.msra.mxu0 0.0
        %414 = vmatpush.msra.mxu0 0.0
        %415 = vmatpush.msra.mxu0 0.0
        %416 = vmatpush.msra.mxu0 0.0
        %417 = vmatpush.msra.mxu0 0.0
        %418 = vmatpush.msra.mxu0 0.0
        %419 = vmatpush.msra.mxu0 0.0
        %420 = vmatpush.msra.mxu0 0.0
        %421 = vmatpush.msra.mxu0 0.0
        %422 = vmatpush.msra.mxu0 0.0
        %423 = vmatpush.msra.mxu0 0.0
        %424 = vmatpush.msra.mxu0 0.0
        %425 = vmatpush.msra.mxu0 0.0
        %426 = vmatpush.msra.mxu0 %v178
        %427 = vmatpush.msra.mxu0 %v177
        %428 = vmatmul.f32.gmra.mxu0 %v407
        %v429 = vpop.f32.mrf.mxu0
        %v430 = vadd.f32 0.0, %v429
        %431 = vmatmul.f32.gmra.mxu0 %v410
        %v432 = vpop.f32.mrf.mxu0
        %v433 = vadd.f32 0.0, %v432
        %434 = vdwg.mxu0
        %v436 = vsel %vm184, %v401, 0
        %v439 = vsel %vm184, %v402, 0
        %441 = vmatpush.msra.mxu0 0.0
        %442 = vmatpush.msra.mxu0 0.0
        %443 = vmatpush.msra.mxu0 0.0
        %444 = vmatpush.msra.mxu0 0.0
        %445 = vmatpush.msra.mxu0 0.0
        %446 = vmatpush.msra.mxu0 0.0
        %447 = vmatpush.msra.mxu0 0.0
        %448 = vmatpush.msra.mxu0 0.0
        %449 = vmatpush.msra.mxu0 0.0
        %450 = vmatpush.msra.mxu0 0.0
        %451 = vmatpush.msra.mxu0 0.0
        %452 = vmatpush.msra.mxu0 0.0
        %453 = vmatpush.msra.mxu0 0.0
        %454 = vmatpush.msra.mxu0 0.0
        %455 = vmatpush.msra.mxu0 %v170
        %456 = vmatpush.msra.mxu0 %v169
        %457 = vmatmul.f32.gmra.mxu0 %v436
        %v458 = vpop.f32.mrf.mxu0
        %v459 = vadd.f32 %v430, %v458
        %460 = vmatmul.f32.gmra.mxu0 %v439
        %v461 = vpop.f32.mrf.mxu0
        %v462 = vadd.f32 %v433, %v461
        %463 = vdwg.mxu0
        %v466 = vrot.slane %v459, 1
        %v467 = vrot.slane %v459, 2
        %v468 = vrot.slane %v459, 3
        %v469 = vrot.slane %v459, 4
        %v470 = vrot.slane %v459, 5
        %v471 = vrot.slane %v459, 6
        %v472 = vrot.slane %v459, 7
        %v473 = vrot.slane %v462, 1
        %v474 = vrot.slane %v462, 2
        %v475 = vrot.slane %v462, 3
        %v476 = vrot.slane %v462, 4
        %v477 = vrot.slane %v462, 5
        %v478 = vrot.slane %v462, 6
        %v479 = vrot.slane %v462, 7
        %s494 = scalar_lea.vmem %s155, 32 [#allocation5]
        %495 = vst.msk [vmem:[%s494] sm:$0x1] %vm273, %v459
        %496 = vst.msk [vmem:[%s494 + $0x2] sm:$0x1] %vm273, %v466
        %497 = vst.msk [vmem:[%s494 + $0x4] sm:$0x1] %vm273, %v467
        %498 = vst.msk [vmem:[%s494 + $0x6] sm:$0x1] %vm273, %v468
        %499 = vst.msk [vmem:[%s494 + $0x8] sm:$0x1] %vm273, %v469
        %500 = vst.msk [vmem:[%s494 + $0xa] sm:$0x1] %vm273, %v470
        %501 = vst.msk [vmem:[%s494 + $0xc] sm:$0x1] %vm273, %v471
        %502 = vst.msk [vmem:[%s494 + $0xe] sm:$0x1] %vm273, %v472
        %503 = vst.msk [vmem:[%s494 + $0x10] sm:$0x1] %vm273, %v462
        %504 = vst.msk [vmem:[%s494 + $0x12] sm:$0x1] %vm273, %v473
        %505 = vst.msk [vmem:[%s494 + $0x14] sm:$0x1] %vm273, %v474
        %506 = vst.msk [vmem:[%s494 + $0x16] sm:$0x1] %vm273, %v475
        %507 = vst.msk [vmem:[%s494 + $0x18] sm:$0x1] %vm273, %v476
        %508 = vst.msk [vmem:[%s494 + $0x1a] sm:$0x1] %vm273, %v477
        %509 = vst.msk [vmem:[%s494 + $0x1c] sm:$0x1] %vm273, %v478
        %510 = vst.msk [vmem:[%s494 + $0x1e] sm:$0x1] %vm273, %v479
        %s511 = scalar_lea.vmem %s136, 96 [#allocation2]
        %v512 = vld [vmem:[%s511] sm:$0xff]
        %v513 = vld [vmem:[%s511 + $0x8] sm:$0xff]
        %s514 = scalar_lea.vmem %s136, 112 [#allocation2]
        %v515 = vld [vmem:[%s514] sm:$0xff]
        %v516 = vld [vmem:[%s514 + $0x8] sm:$0xff]
        %v518 = vsel %vm184, %v515, 0
        %v521 = vsel %vm184, %v516, 0
        %523 = vmatpush.msra.mxu0 0.0
        %524 = vmatpush.msra.mxu0 0.0
        %525 = vmatpush.msra.mxu0 0.0
        %526 = vmatpush.msra.mxu0 0.0
        %527 = vmatpush.msra.mxu0 0.0
        %528 = vmatpush.msra.mxu0 0.0
        %529 = vmatpush.msra.mxu0 0.0
        %530 = vmatpush.msra.mxu0 0.0
        %531 = vmatpush.msra.mxu0 0.0
        %532 = vmatpush.msra.mxu0 0.0
        %533 = vmatpush.msra.mxu0 0.0
        %534 = vmatpush.msra.mxu0 0.0
        %535 = vmatpush.msra.mxu0 0.0
        %536 = vmatpush.msra.mxu0 0.0
        %537 = vmatpush.msra.mxu0 %v178
        %538 = vmatpush.msra.mxu0 %v177
        %539 = vmatmul.f32.gmra.mxu0 %v518
        %v540 = vpop.f32.mrf.mxu0
        %v541 = vadd.f32 0.0, %v540
        %542 = vmatmul.f32.gmra.mxu0 %v521
        %v543 = vpop.f32.mrf.mxu0
        %v544 = vadd.f32 0.0, %v543
        %545 = vdwg.mxu0
        %v547 = vsel %vm184, %v512, 0
        %v550 = vsel %vm184, %v513, 0
        %552 = vmatpush.msra.mxu0 0.0
        %553 = vmatpush.msra.mxu0 0.0
        %554 = vmatpush.msra.mxu0 0.0
        %555 = vmatpush.msra.mxu0 0.0
        %556 = vmatpush.msra.mxu0 0.0
        %557 = vmatpush.msra.mxu0 0.0
        %558 = vmatpush.msra.mxu0 0.0
        %559 = vmatpush.msra.mxu0 0.0
        %560 = vmatpush.msra.mxu0 0.0
        %561 = vmatpush.msra.mxu0 0.0
        %562 = vmatpush.msra.mxu0 0.0
        %563 = vmatpush.msra.mxu0 0.0
        %564 = vmatpush.msra.mxu0 0.0
        %565 = vmatpush.msra.mxu0 0.0
        %566 = vmatpush.msra.mxu0 %v170
        %567 = vmatpush.msra.mxu0 %v169
        %568 = vmatmul.f32.gmra.mxu0 %v547
        %v569 = vpop.f32.mrf.mxu0
        %v570 = vadd.f32 %v541, %v569
        %571 = vmatmul.f32.gmra.mxu0 %v550
        %v572 = vpop.f32.mrf.mxu0
        %v573 = vadd.f32 %v544, %v572
        %574 = vdwg.mxu0
        %v577 = vrot.slane %v570, 1
        %v578 = vrot.slane %v570, 2
        %v579 = vrot.slane %v570, 3
        %v580 = vrot.slane %v570, 4
        %v581 = vrot.slane %v570, 5
        %v582 = vrot.slane %v570, 6
        %v583 = vrot.slane %v570, 7
        %v584 = vrot.slane %v573, 1
        %v585 = vrot.slane %v573, 2
        %v586 = vrot.slane %v573, 3
        %v587 = vrot.slane %v573, 4
        %v588 = vrot.slane %v573, 5
        %v589 = vrot.slane %v573, 6
        %v590 = vrot.slane %v573, 7
        %605 = vst.msk [vmem:[%s494 + $0x1] sm:$0x1] %vm273, %v570
        %606 = vst.msk [vmem:[%s494 + $0x3] sm:$0x1] %vm273, %v577
        %607 = vst.msk [vmem:[%s494 + $0x5] sm:$0x1] %vm273, %v578
        %608 = vst.msk [vmem:[%s494 + $0x7] sm:$0x1] %vm273, %v579
        %609 = vst.msk [vmem:[%s494 + $0x9] sm:$0x1] %vm273, %v580
        %610 = vst.msk [vmem:[%s494 + $0xb] sm:$0x1] %vm273, %v581
        %611 = vst.msk [vmem:[%s494 + $0xd] sm:$0x1] %vm273, %v582
        %612 = vst.msk [vmem:[%s494 + $0xf] sm:$0x1] %vm273, %v583
        %613 = vst.msk [vmem:[%s494 + $0x11] sm:$0x1] %vm273, %v573
        %614 = vst.msk [vmem:[%s494 + $0x13] sm:$0x1] %vm273, %v584
        %615 = vst.msk [vmem:[%s494 + $0x15] sm:$0x1] %vm273, %v585
        %616 = vst.msk [vmem:[%s494 + $0x17] sm:$0x1] %vm273, %v586
        %617 = vst.msk [vmem:[%s494 + $0x19] sm:$0x1] %vm273, %v587
        %618 = vst.msk [vmem:[%s494 + $0x1b] sm:$0x1] %vm273, %v588
        %619 = vst.msk [vmem:[%s494 + $0x1d] sm:$0x1] %vm273, %v589
        %620 = vst.msk [vmem:[%s494 + $0x1f] sm:$0x1] %vm273, %v590
        %s621 = sand.u32 %s68, 1
        %s622 = scalar_lea.sflag [#allocation4], %s621
        %s623 = sand.u32 %s68, 1
        %s624 = smul.addr %s623, 64
        %s625 = scalar_lea.vmem [#allocation5], %s624
        // Predicated region
        $region29: #{tpu_custom_call.1} parent=23 // pred_check
          %p626 = pneg %p78
        $region30: #{tpu_custom_call.1} parent=23 // pred_check_branch
          %628 = sbr.rel (%p626) target = $region32
        $region31: #{tpu_custom_call.1} parent=23 // pred_region
          %s629 = smul.u32 2, %s23
          %631 = vsyncadd %s622, 0
          %s632 = smul.addr %s629, 16
          %s633 = smul.addr %s22, 32
          %s634 = sadd.s32 %s632, %s633
          %s635 = smul.addr %s634, 2
          %s636 = scalar_lea.hbm %s1, %s635
          %s637 = sshll.u32 %s625, 4
          %s638 = int_to_ptr.vmem [resolvable:$true] %s637
          %s639 = sshll.u32 %s636, 4
          %s640 = int_to_ptr.hbm [resolvable:$true] %s639
          %645 = dma.vmem_to_hbm [thread:$0]  %s638, 1024, %s640, %s622, 32, 32, 2
        $region32: #{tpu_custom_call.1} parent=23 // pred_fallthru
          _
      $region24: #{tpu_custom_call.1} parent=5 // pred_fallthru
        _
      %p646 = scmp.le.s32.totalorder 2, %s13
      // Predicated region
      $region33: #{tpu_custom_call.1} parent=5 // pred_check
        %p647 = pneg %p646
      $region34: #{tpu_custom_call.1} parent=5 // pred_check_branch
        %649 = sbr.rel (%p647) target = $region36
      $region35: #{tpu_custom_call.1} parent=5 // pred_region
        %s650 = ssub.s32 %s13, 2
        // Predicated region
        $region37: #{tpu_custom_call.1} parent=35 // pred_check
          %p651 = pneg %p84
        $region38: #{tpu_custom_call.1} parent=35 // pred_check_branch
          %653 = sbr.rel (%p651) target = $region40
        $region39: #{tpu_custom_call.1} parent=35 // pred_region
          %s654 = sand.u32 %s69, 1
          %s655 = scalar_lea.sflag [#allocation4], %s654
          %s656 = sand.u32 %s69, 1
          %s657 = smul.addr %s656, 64
          %s658 = scalar_lea.vmem [#allocation5], %s657
          %660 = dma.done %s655, 1024
        $region40: #{tpu_custom_call.1} parent=35 // pred_fallthru
          _
      $region36: #{tpu_custom_call.1} parent=5 // pred_fallthru
        _
    $region6: #{tpu_custom_call.1} parent=1 // loop_footer
      %s17 = sadd.s32 1, %s13
    $region7: #{tpu_custom_call.1} parent=1 // loop_footer_branch
      %12 = sbr.rel target = $region3
    $region8: #{tpu_custom_call.1} parent=1 // loop_exit
      _
    %661 = vsyncpa [#allocation3], 1
    %s662 = scalar_lea.sflag [#allocation3], 1
    %663 = vsyncpa %s662, 1
    %664 = vsyncpa [#allocation4], 1
    %s665 = scalar_lea.sflag [#allocation4], 1
    %666 = vsyncpa %s665, 1

</llo_original>
